<compile_context>
chip_gen: v7x
topology: tpu7x:2x2x1
jax: 0.10.0
libtpu: 0.0.40
codegen_flags: <defaults>
</compile_context>

<pallas_src>
import jax
import jax.numpy as jnp
from jax.experimental import pallas as pl
from jax.experimental.pallas import tpu as pltpu


def _round_up(n, m):
    return ((n + m - 1) // m) * m


def _mlp_fused_kernel(params_ref, xT_ref, oT_ref):
    """o^T[0,:] = W0 * x^T[0,:] + W1 * x^T[1,:] + b  for one (2, TILE_B) block.

    params_ref : SMEM (3,) f32 -> [W0, W1, b]
    xT_ref     : VMEM (2, TILE_B)   (batch on lanes, features on sublanes)
    oT_ref     : VMEM (1, TILE_B)
    """
    w0 = params_ref[0]
    w1 = params_ref[1]
    b = params_ref[2]
    x0 = xT_ref[0:1, :]            # direct row loads; no padded full-tile temp
    x1 = xT_ref[1:2, :]
    # Pure VPU: two broadcast muls + two adds, no MXU involvement.
    oT_ref[...] = (w0 * x0 + w1 * x1 + b).astype(oT_ref.dtype)


def _fuse_params(w1, b1, w2, b2):
    # (x @ w1.T + b1) @ w2.T + b2 == x @ (w1.T @ w2.T) + (b1 @ w2.T + b2)
    w_fused = (w1.T @ w2.T).reshape(2).astype(jnp.float32)      # (2,)
    b_fused = (b1 @ w2.T + b2).reshape(1).astype(jnp.float32)   # (1,)
    return jnp.concatenate([w_fused, b_fused])                  # (3,)


def mlp_forward_feature_major(xT, w1, b1, w2, b2, *, tile_b=32768):
    """Pallas path. xT: (2, B) feature-major activations. Returns (B, 1)."""
    assert xT.shape[0] == 2, "expected feature-major (2, B) input"
    B = xT.shape[1]
    params = _fuse_params(w1, b1, w2, b2)

    # Lane-dense tiling: TILE_B a multiple of 128, capped at the padded batch.
    tile_b = _round_up(max(128, min(tile_b, _round_up(B, 128))), 128)
    b_pad = _round_up(B, tile_b)
    if b_pad != B:
        # Explicit tail handling: pad instead of masking the last block.
        # For peak perf feed batches that are already a multiple of tile_b.
        xT = jnp.pad(xT, ((0, 0), (0, b_pad - B)))
    num_tiles = b_pad // tile_b

    # Overhead-advisory cost estimate for XLA's scheduler (kernel is HBM-bound).
    flops = 4 * b_pad                                 # 2 mul + 2 add per element
    bytes_accessed = (2 * b_pad + b_pad + 3) * 4

    oT = pl.pallas_call(
        _mlp_fused_kernel,
        grid=(num_tiles,),
        in_specs=[
            pl.BlockSpec(memory_space=pltpu.MemorySpace.SMEM),   # (3,) fused params
            pl.BlockSpec((2, tile_b), lambda i: (0, i)),         # x^T lane tile
        ],
        out_specs=pl.BlockSpec((1, tile_b), lambda i: (0, i)),
        out_shape=jax.ShapeDtypeStruct((1, b_pad), xT.dtype),
        compiler_params=pltpu.CompilerParams(
            dimension_semantics=("parallel",)),
        cost_estimate=pl.CostEstimate(
            flops=flops, transcendentals=0, bytes_accessed=bytes_accessed),
    )(params, xT)

    return oT[:, :B].T                                           # (B, 1)


def mlp_forward(x, w1, b1, w2, b2, *, tile_b=32768, force_pallas=False,
                small_batch_threshold=512):
    """PyTorch-compatible entry point. x: (B, 2) -> (B, 1) == fc2(fc1(x))."""
    B = x.shape[0]
    if not force_pallas and B < small_batch_threshold:
        # ~4*B FLOPs: pallas_call launch + DMA setup would dominate; let XLA fuse.
        params = _fuse_params(w1, b1, w2, b2)
        out = x.astype(jnp.float32) @ params[:2].reshape(2, 1) + params[2]
        return out.astype(x.dtype)
    # NOTE: x.T is a standalone HBM pass; producers that can emit activations
    # feature-major should call mlp_forward_feature_major directly.
    return mlp_forward_feature_major(x.T, w1, b1, w2, b2, tile_b=tile_b)


if __name__ == "__main__":
    key = jax.random.PRNGKey(0)
    kx, kx2, k1, k2, k3, k4 = jax.random.split(key, 6)

    # PyTorch nn.Linear parameter shapes: weight (out, in), bias (out,).
    bound = 1.0 / jnp.sqrt(2.0)
    w1 = jax.random.uniform(k1, (2, 2), jnp.float32, -bound, bound)
    b1 = jax.random.uniform(k2, (2,), jnp.float32, -bound, bound)
    w2 = jax.random.uniform(k3, (1, 2), jnp.float32, -bound, bound)
    b2 = jax.random.uniform(k4, (1,), jnp.float32, -bound, bound)

    def ref_forward(x):
        return (x @ w1.T + b1) @ w2.T + b2   # same math as the PyTorch forward

    # 1) Tiny batch forced through the Pallas kernel (padded to one 128-lane tile).
    x_small = jax.random.normal(kx, (8, 2), dtype=jnp.float32)
    out_small = jax.block_until_ready(
        mlp_forward(x_small, w1, b1, w2, b2, force_pallas=True))
    assert out_small.shape == (8, 1)
    assert jnp.allclose(out_small, ref_forward(x_small), atol=1e-5, rtol=1e-5)

    # 2) Multi-tile pipelined grid: 1024 batch = 4 blocks of 256 lanes.
    x_big = jax.random.normal(kx2, (1024, 2), dtype=jnp.float32)
    out_big = jax.block_until_ready(
        mlp_forward(x_big, w1, b1, w2, b2, tile_b=256))
    assert out_big.shape == (1024, 1)
    assert jnp.allclose(out_big, ref_forward(x_big), atol=1e-5, rtol=1e-5)

    # 3) Feature-major fast path (no wrapper-side transpose of the activations).
    out_fm = jax.block_until_ready(
        mlp_forward_feature_major(x_big.T, w1, b1, w2, b2, tile_b=256))
    assert jnp.allclose(out_fm, ref_forward(x_big), atol=1e-5, rtol=1e-5)

    # 4) Small-batch XLA fallback path (Pallas bypass).
    out_fb = jax.block_until_ready(mlp_forward(x_small, w1, b1, w2, b2))
    assert jnp.allclose(out_fb, ref_forward(x_small), atol=1e-5, rtol=1e-5)

    print("KERNEL_OK")
</pallas_src>

<mosaic_0001>
module attributes {stable_mosaic.version = 11 : i64} {
  func.func @_mlp_fused_kernel(%arg0: i32, %arg1: memref<3xf32, #tpu.memory_space<smem>>, %arg2: memref<2x128xf32, #tpu.memory_space<vmem>>, %arg3: memref<1x128xf32, #tpu.memory_space<vmem>>) attributes {dimension_semantics = [#tpu.dimension_semantics<parallel>], iteration_bounds = array<i64: 1>, scalar_prefetch = 0 : i64, scratch_operands = 0 : i64, tpu.core_type = #tpu.core_type<tc>, window_params = [{transform_indices = @transform_0, window_bounds = array<i64: 3>}, {transform_indices = @transform_1, window_bounds = array<i64: 2, 128>}, {transform_indices = @transform_2, window_bounds = array<i64: 1, 128>}]} {
    %c0 = arith.constant 0 : index
    %0 = memref.load %arg1[%c0] : memref<3xf32, #tpu.memory_space<smem>>
    %c1 = arith.constant 1 : index
    %1 = memref.load %arg1[%c1] : memref<3xf32, #tpu.memory_space<smem>>
    %c2 = arith.constant 2 : index
    %2 = memref.load %arg1[%c2] : memref<3xf32, #tpu.memory_space<smem>>
    %c0_0 = arith.constant 0 : index
    %c0_1 = arith.constant 0 : index
    %3 = vector.load %arg2[%c0_0, %c0_1] : memref<2x128xf32, #tpu.memory_space<vmem>>, vector<1x128xf32>
    %c1_2 = arith.constant 1 : index
    %c0_3 = arith.constant 0 : index
    %4 = vector.load %arg2[%c1_2, %c0_3] : memref<2x128xf32, #tpu.memory_space<vmem>>, vector<1x128xf32>
    %5 = vector.broadcast %0 : f32 to vector<1x128xf32>
    %6 = arith.mulf %5, %3 : vector<1x128xf32>
    %7 = vector.broadcast %1 : f32 to vector<1x128xf32>
    %8 = arith.mulf %7, %4 : vector<1x128xf32>
    %9 = arith.addf %6, %8 : vector<1x128xf32>
    %10 = vector.broadcast %2 : f32 to vector<1x128xf32>
    %11 = arith.addf %9, %10 : vector<1x128xf32>
    %c0_4 = arith.constant 0 : index
    %c0_5 = arith.constant 0 : index
    %12 = vector.load %arg3[%c0_4, %c0_5] : memref<1x128xf32, #tpu.memory_space<vmem>>, vector<1x128xf32>
    tpu.vector_store %arg3[%c0_4, %c0_5], %11 {strides = array<i32>} : memref<1x128xf32, #tpu.memory_space<vmem>>, vector<1x128xf32>,
    return
  }
  func.func @transform_0(%arg0: i32) -> i32 {
    %c0_i32 = arith.constant 0 : i32
    %c0_i32_0 = arith.constant 0 : i32
    return %c0_i32 : i32
  }
  func.func @transform_1(%arg0: i32) -> (i32, i32) {
    %c0_i32 = arith.constant 0 : i32
    %c0_i32_0 = arith.constant 0 : i32
    return %c0_i32, %arg0 : i32, i32
  }
  func.func @transform_2(%arg0: i32) -> (i32, i32) {
    %c0_i32 = arith.constant 0 : i32
    %c0_i32_0 = arith.constant 0 : i32
    return %c0_i32, %arg0 : i32, i32
  }
}

</mosaic_0001>

<llo_original>
// kernel: tpu_custom_call.1
$region0: #{tpu_custom_call.1}
  #allocation0 [shape = 'u32[]', space=smem, size = 0x4, offset = 0x4, fixed_abs, tag = 'smem constant byte address 0x4 - core index']
  #allocation1 [shape = 'u32[144,128]{1,0:T(1,128)}', space=vmem, size = 0x12000, scoped, tag = 'internal scratch']
  %s0 = inlined_call_operand.hbm [shape: f32[3], index: 0, kind: input, shape index: {}]
  %s1 = inlined_call_operand.vmem [shape: f32[2,128], index: 1, kind: input, shape index: {}]
  %s2 = inlined_call_operand.hbm [shape: f32[1,128], index: 2, kind: output, shape index: {}]
  %s3 = sld [smem:[#allocation0]]
  $region22: #{tpu_custom_call.1} parent=0
    _
  %s5 = ssub.s32 1, %s3
  %s6 = scalar_select 0, %s5, %s3
  $region1: #{tpu_custom_call.1} parent=0
    #allocation2 [shape = 'u8[512]{0}', space=smem, size = 0x200, scoped, tag = 'input window, operand 0, single buffered']
    #allocation3 [shape = 's32[1]{0}', space=sflag, size = 0x4, scoped, tag = 'scoped memory for tpu_custom_call.1']
    #allocation4 [shape = 's32[1]{0}', space=sflag, size = 0x4, scoped, tag = 'scoped memory for tpu_custom_call.1']
    #allocation5 [shape = 'u8[512]{0}', space=vmem, size = 0x400, scoped, tag = 'output window, operand 0, single buffered']
    %7 = vsyncpa [#allocation4], 0
    %8 = vsyncpa [#allocation3], 0
    // Predicated region
    $region2: #{tpu_custom_call.1} parent=1 // pred_check
      _
    $region3: #{tpu_custom_call.1} parent=1 // pred_check_branch
      %10 = sbr.rel (0) target = $region5
    $region4: #{tpu_custom_call.1} parent=1 // pred_region
      %s12 = ssub.s32 16, 16
      %13 = vsyncadd [#allocation4], %s12
      %16 = dma.hbm_to_smem %s0, 16, [#allocation2], [#allocation4]
    $region5: #{tpu_custom_call.1} parent=1 // pred_fallthru
      _
    // Predicated region
    $region6: #{tpu_custom_call.1} parent=1 // pred_check
      _
    $region7: #{tpu_custom_call.1} parent=1 // pred_check_branch
      %18 = sbr.rel (0) target = $region9
    $region8: #{tpu_custom_call.1} parent=1 // pred_region
      _
    $region9: #{tpu_custom_call.1} parent=1 // pred_fallthru
      _
    // Predicated region
    $region10: #{tpu_custom_call.1} parent=1 // pred_check
      _
    $region11: #{tpu_custom_call.1} parent=1 // pred_check_branch
      %20 = sbr.rel (0) target = $region13
    $region12: #{tpu_custom_call.1} parent=1 // pred_region
      %21 = dma.done [#allocation4], 16
    $region13: #{tpu_custom_call.1} parent=1 // pred_fallthru
      _
    %22 = sfence
    %s23 = sld [smem:[#allocation2]]
    %s24 = sld [smem:[#allocation2 + $0x1]]
    %s25 = sld [smem:[#allocation2 + $0x2]]
    %v26 = vld [vmem:[%s1] sm:$0x1]
    %v27 = vld [vmem:[%s1 + $0x1] sm:$0x1]
    %v28 = vstv %s23
    %v29 = vmul.f32 %v28, %v26
    %v30 = vstv %s24
    %v31 = vmul.f32 %v30, %v27
    %v32 = vadd.f32 %v29, %v31
    %v33 = vstv %s25
    %v34 = vadd.f32 %v32, %v33
    %35 = vst [vmem:[#allocation5] sm:$0x1] %v34
    // Predicated region
    $region14: #{tpu_custom_call.1} parent=1 // pred_check
      _
    $region15: #{tpu_custom_call.1} parent=1 // pred_check_branch
      %37 = sbr.rel (0) target = $region17
    $region16: #{tpu_custom_call.1} parent=1 // pred_region
      %s39 = ssub.s32 16, 16
      %40 = vsyncadd [#allocation3], %s39
      %s42 = sshll.u32 [#allocation5], 4
      %s43 = int_to_ptr.vmem [resolvable:$true] %s42
      %45 = dma.vmem_to_hbm [thread:$0]  %s43, 16, %s2, [#allocation3]
    $region17: #{tpu_custom_call.1} parent=1 // pred_fallthru
      _
    // Predicated region
    $region18: #{tpu_custom_call.1} parent=1 // pred_check
      _
    $region19: #{tpu_custom_call.1} parent=1 // pred_check_branch
      %47 = sbr.rel (0) target = $region21
    $region20: #{tpu_custom_call.1} parent=1 // pred_region
      %48 = dma.done [#allocation3], 16
    $region21: #{tpu_custom_call.1} parent=1 // pred_fallthru
      _
    %49 = vsyncpa [#allocation3], 1
    %50 = vsyncpa [#allocation4], 1

</llo_original>
